<compile_context>
chip_gen: v5e
topology: v5e:2x2
jax: 0.10.0
libtpu: 0.0.40
codegen_flags: <defaults>
</compile_context>

<pallas_src>
import functools

import jax
import jax.numpy as jnp
from jax.experimental import pallas as pl
from jax.experimental.pallas import tpu as pltpu


def _round_up(x: int, m: int) -> int:
    return ((x + m - 1) // m) * m


# --------------------------------------------------------------------------
# Kernel
# --------------------------------------------------------------------------
def classifier_kernel(x_ref, w1_ref, b1_ref, w2_ref, b2_ref, o_ref):
    # In-kernel f32 -> bf16 cast of activations (free under the MXU); avoids a
    # separate wrapper pad/cast pass over x in HBM.
    x_bf = x_ref[...].astype(jnp.bfloat16)
    # Backbone: Linear(in_features -> H_pad), bf16 operands, f32 accumulation.
    h = jnp.dot(x_bf, w1_ref[...], preferred_element_type=jnp.float32)
    # Bias + ReLU epilogue in f32 (v5e has no bf16 VPU; f32 VPU co-issues).
    h = jnp.maximum(h + b1_ref[...], 0.0)
    # Head: Linear(H_pad -> C_pad), bf16 operands, f32 accumulation.
    y = jnp.dot(h.astype(jnp.bfloat16), w2_ref[...],
                preferred_element_type=jnp.float32)
    o_ref[...] = (y + b2_ref[...]).astype(o_ref.dtype)  # lane-dense bf16 store


# --------------------------------------------------------------------------
# One-time parameter prep (hoisted out of the per-call path)
# --------------------------------------------------------------------------
def prepare_classifier_params(w1, b1, w2, b2):
    """Pad H/C to lane-dense 128 multiples and cast weights to bf16, ONCE.

    w1: [Fin, H]  b1: [H]   (synthetic backbone `net`)
    w2: [H, C]    b2: [C]   (self.fcn); weights stored as [in, out].
    """
    Fin, H = w1.shape
    C = w2.shape[1]
    H_pad = _round_up(H, 128)
    C_pad = _round_up(C, 128)
    w1_p = jnp.zeros((Fin, H_pad), jnp.bfloat16).at[:, :H].set(
        w1.astype(jnp.bfloat16))
    b1_p = jnp.zeros((1, H_pad), jnp.float32).at[0, :H].set(
        b1.astype(jnp.float32))
    w2_p = jnp.zeros((H_pad, C_pad), jnp.bfloat16).at[:H, :C].set(
        w2.astype(jnp.bfloat16))
    b2_p = jnp.zeros((H_pad := H_pad, C_pad), jnp.float32)[:1].at[0, :C].set(
        b2.astype(jnp.float32)) if False else jnp.zeros(
        (1, C_pad), jnp.float32).at[0, :C].set(b2.astype(jnp.float32))
    return {"w1": w1_p, "b1": b1_p, "w2": w2_p, "b2": b2_p, "num_class": C}


# --------------------------------------------------------------------------
# Forward
# --------------------------------------------------------------------------
@functools.partial(jax.jit, static_argnames=("max_tile_b",))
def classifier_forward(x, params, *, max_tile_b=1024):
    """x: [B, in_features] f32.  Returns the PADDED logits slab
    [B_pad, C_pad] in bf16; consumers take [:B, :num_class] (fused into the
    consumer instead of an extra slice pass here)."""
    w1_p, b1_p = params["w1"], params["b1"]
    w2_p, b2_p = params["w2"], params["b2"]
    B, Fin = x.shape
    H_pad = w1_p.shape[1]
    C_pad = w2_p.shape[1]

    # Batch tiling: one big block for small/medium batches (single grid step,
    # overhead paid once); 1024-row tiles for large batches (>=2-4 tiles per
    # TensorCore for megacore + pipelining).
    B8 = _round_up(B, 8)
    tile_b = B8 if B8 <= 2048 else max_tile_b
    B_pad = _round_up(B, tile_b)

    # Only pad the batch if strictly necessary (no-op copy otherwise).
    x_in = x if B_pad == B else jnp.zeros((B_pad, Fin), x.dtype).at[:B].set(x)

    grid = (B_pad // tile_b,)

    flops = 2 * B_pad * (Fin * H_pad + H_pad * C_pad)
    bytes_accessed = (x_in.size * 4 + w1_p.size * 2 + b1_p.size * 4
                      + w2_p.size * 2 + b2_p.size * 4 + B_pad * C_pad * 2)

    out = pl.pallas_call(
        classifier_kernel,
        out_shape=jax.ShapeDtypeStruct((B_pad, C_pad), jnp.bfloat16),
        grid_spec=pltpu.PrefetchScalarGridSpec(
            num_scalar_prefetch=0,
            grid=grid,
            in_specs=[
                # Activations: tiled along batch (pipelined/double-buffered).
                pl.BlockSpec((tile_b, Fin), lambda i: (i, 0)),
                # Weights & biases: constant index_map -> single DMA,
                # VMEM-resident across all grid steps.
                pl.BlockSpec((Fin, H_pad), lambda i: (0, 0)),
                pl.BlockSpec((1, H_pad), lambda i: (0, 0)),
                pl.BlockSpec((H_pad, C_pad), lambda i: (0, 0)),
                pl.BlockSpec((1, C_pad), lambda i: (0, 0)),
            ],
            out_specs=pl.BlockSpec((tile_b, C_pad), lambda i: (i, 0)),
        ),
        compiler_params=pltpu.CompilerParams(
            dimension_semantics=("parallel",)),  # shards tiles across TCs
        cost_estimate=pl.CostEstimate(
            flops=flops, transcendentals=0, bytes_accessed=bytes_accessed),
    )(x_in, w1_p, b1_p, w2_p, b2_p)

    return out  # padded slab; slice [:B, :num_class] at the consumer


def _torch_style_linear_init(key, fan_in, fan_out):
    """Deterministic init mimicking nn.Linear (uniform +-1/sqrt(fan_in)),
    stored as [in, out] (torch weight transposed)."""
    kw, kb = jax.random.split(key)
    bound = 1.0 / jnp.sqrt(fan_in)
    w = jax.random.uniform(kw, (fan_in, fan_out), jnp.float32, -bound, bound)
    b = jax.random.uniform(kb, (fan_out,), jnp.float32, -bound, bound)
    return w, b


if __name__ == "__main__":
    # Synthetic backbone `net`: in_features=32 -> out_channels=64 (+ReLU),
    # head: 64 -> num_class=20.  B=256 collapses to a single grid step.
    # TODO(synk): `net` is a constructor argument in the PyTorch module; a
    # Linear+ReLU backbone stands in for it here.
    B, Fin, H, C = 256, 32, 64, 20

    key = jax.random.PRNGKey(0)
    kx, k1, k2 = jax.random.split(key, 3)

    x = jax.random.normal(kx, (B, Fin), jnp.float32)
    w1, b1 = _torch_style_linear_init(k1, Fin, H)   # synthetic backbone `net`
    w2, b2 = _torch_style_linear_init(k2, H, C)     # self.fcn

    # One-time parameter prep (padding + bf16 cast hoisted out of the call).
    params = prepare_classifier_params(w1, b1, w2, b2)

    out_slab = classifier_forward(x, params)
    jax.block_until_ready(out_slab)

    # Consumer-side slice of the padded slab -> logical logits.
    logits = out_slab[:B, :C].astype(jnp.float32)
    assert logits.shape == (B, C)

    # Tight check against a reference mirroring the kernel's bf16 quantization
    # of operands / intermediate activation (f32 accumulation everywhere),
    # allowing for the bf16 output rounding.
    xq = x.astype(jnp.bfloat16).astype(jnp.float32)
    w1q = w1.astype(jnp.bfloat16).astype(jnp.float32)
    w2q = w2.astype(jnp.bfloat16).astype(jnp.float32)
    hq = jnp.maximum(xq @ w1q + b1, 0.0)
    refq = hq.astype(jnp.bfloat16).astype(jnp.float32) @ w2q + b2
    assert jnp.allclose(logits, refq, atol=2e-2, rtol=2e-2)

    # Loose check against the pure-f32 torch-equivalent forward.
    ref = jnp.maximum(x @ w1 + b1, 0.0) @ w2 + b2
    assert jnp.allclose(logits, ref, atol=6e-2, rtol=6e-2)

    print("KERNEL_OK")
</pallas_src>

<mosaic_0001>
module attributes {stable_mosaic.version = 11 : i64} {
  func.func @classifier_kernel(%arg0: i32, %arg1: memref<256x32xf32, #tpu.memory_space<vmem>>, %arg2: memref<32x128xbf16, #tpu.memory_space<vmem>>, %arg3: memref<1x128xf32, #tpu.memory_space<vmem>>, %arg4: memref<128x128xbf16, #tpu.memory_space<vmem>>, %arg5: memref<1x128xf32, #tpu.memory_space<vmem>>, %arg6: memref<256x128xbf16, #tpu.memory_space<vmem>>) attributes {dimension_semantics = [#tpu.dimension_semantics<parallel>], iteration_bounds = array<i64: 1>, scalar_prefetch = 0 : i64, scratch_operands = 0 : i64, tpu.core_type = #tpu.core_type<tc>, window_params = [{transform_indices = @transform_0, window_bounds = array<i64: 256, 32>}, {pipeline_mode = #tpu.pipeline_mode<synchronous>, transform_indices = @transform_1, window_bounds = array<i64: 32, 128>}, {pipeline_mode = #tpu.pipeline_mode<synchronous>, transform_indices = @transform_2, window_bounds = array<i64: 1, 128>}, {pipeline_mode = #tpu.pipeline_mode<synchronous>, transform_indices = @transform_3, window_bounds = array<i64: 128, 128>}, {pipeline_mode = #tpu.pipeline_mode<synchronous>, transform_indices = @transform_4, window_bounds = array<i64: 1, 128>}, {transform_indices = @transform_5, window_bounds = array<i64: 256, 128>}]} {
    %c0 = arith.constant 0 : index
    %c0_0 = arith.constant 0 : index
    %0 = vector.load %arg1[%c0, %c0_0] : memref<256x32xf32, #tpu.memory_space<vmem>>, vector<256x32xf32>
    %1 = arith.truncf %0 : vector<256x32xf32> to vector<256x32xbf16>
    %c0_1 = arith.constant 0 : index
    %c0_2 = arith.constant 0 : index
    %2 = vector.load %arg2[%c0_1, %c0_2] : memref<32x128xbf16, #tpu.memory_space<vmem>>, vector<32x128xbf16>
    %cst = arith.constant dense<0.000000e+00> : vector<256x128xf32>
    %3 = tpu.matmul %1, %2, %cst {dimension_numbers = #tpu.dot_dimension_numbers<[1], [0], [0], [1], [0, 0, 1, 1], [], []>} : vector<256x32xbf16>, vector<32x128xbf16>, vector<256x128xf32> -> vector<256x128xf32>
    %c0_3 = arith.constant 0 : index
    %c0_4 = arith.constant 0 : index
    %4 = vector.load %arg3[%c0_3, %c0_4] : memref<1x128xf32, #tpu.memory_space<vmem>>, vector<1x128xf32>
    %5 = vector.broadcast %4 : vector<1x128xf32> to vector<256x128xf32>
    %6 = arith.addf %3, %5 : vector<256x128xf32>
    %cst_5 = arith.constant 0.000000e+00 : f32
    %7 = vector.broadcast %cst_5 : f32 to vector<256x128xf32>
    %8 = arith.maximumf %6, %7 : vector<256x128xf32>
    %9 = arith.truncf %8 : vector<256x128xf32> to vector<256x128xbf16>
    %c0_6 = arith.constant 0 : index
    %c0_7 = arith.constant 0 : index
    %10 = vector.load %arg4[%c0_6, %c0_7] : memref<128x128xbf16, #tpu.memory_space<vmem>>, vector<128x128xbf16>
    %cst_8 = arith.constant dense<0.000000e+00> : vector<256x128xf32>
    %11 = tpu.matmul %9, %10, %cst_8 {dimension_numbers = #tpu.dot_dimension_numbers<[1], [0], [0], [1], [0, 0, 1, 1], [], []>} : vector<256x128xbf16>, vector<128x128xbf16>, vector<256x128xf32> -> vector<256x128xf32>
    %c0_9 = arith.constant 0 : index
    %c0_10 = arith.constant 0 : index
    %12 = vector.load %arg5[%c0_9, %c0_10] : memref<1x128xf32, #tpu.memory_space<vmem>>, vector<1x128xf32>
    %13 = vector.broadcast %12 : vector<1x128xf32> to vector<256x128xf32>
    %14 = arith.addf %11, %13 : vector<256x128xf32>
    %15 = arith.truncf %14 : vector<256x128xf32> to vector<256x128xbf16>
    %c0_11 = arith.constant 0 : index
    %c0_12 = arith.constant 0 : index
    %16 = vector.load %arg6[%c0_11, %c0_12] : memref<256x128xbf16, #tpu.memory_space<vmem>>, vector<256x128xbf16>
    tpu.vector_store %arg6[%c0_11, %c0_12], %15 {strides = array<i32>} : memref<256x128xbf16, #tpu.memory_space<vmem>>, vector<256x128xbf16>,
    return
  }
  func.func @transform_0(%arg0: i32) -> (i32, i32) {
    %c0_i32 = arith.constant 0 : i32
    %c0_i32_0 = arith.constant 0 : i32
    return %arg0, %c0_i32 : i32, i32
  }
  func.func @transform_1(%arg0: i32) -> (i32, i32) {
    %c0_i32 = arith.constant 0 : i32
    %c0_i32_0 = arith.constant 0 : i32
    %c0_i32_1 = arith.constant 0 : i32
    return %c0_i32, %c0_i32_0 : i32, i32
  }
  func.func @transform_2(%arg0: i32) -> (i32, i32) {
    %c0_i32 = arith.constant 0 : i32
    %c0_i32_0 = arith.constant 0 : i32
    %c0_i32_1 = arith.constant 0 : i32
    return %c0_i32, %c0_i32_0 : i32, i32
  }
  func.func @transform_3(%arg0: i32) -> (i32, i32) {
    %c0_i32 = arith.constant 0 : i32
    %c0_i32_0 = arith.constant 0 : i32
    %c0_i32_1 = arith.constant 0 : i32
    return %c0_i32, %c0_i32_0 : i32, i32
  }
  func.func @transform_4(%arg0: i32) -> (i32, i32) {
    %c0_i32 = arith.constant 0 : i32
    %c0_i32_0 = arith.constant 0 : i32
    %c0_i32_1 = arith.constant 0 : i32
    return %c0_i32, %c0_i32_0 : i32, i32
  }
  func.func @transform_5(%arg0: i32) -> (i32, i32) {
    %c0_i32 = arith.constant 0 : i32
    %c0_i32_0 = arith.constant 0 : i32
    return %arg0, %c0_i32 : i32, i32
  }
}

</mosaic_0001>

<llo_original>
// kernel: classifier_forward.1
$region0: #{classifier_forward.1}
  #allocation0 [shape = 'u32[]', space=smem, size = 0x4, offset = 0x4, fixed_abs, tag = 'smem constant byte address 0x4 - core index']
  #allocation1 [shape = 'u32[72,128]{1,0:T(1,128)}', space=vmem, size = 0x9000, scoped, tag = 'internal scratch']
  %s0 = inlined_call_operand.vmem [shape: f32[256,32], index: 0, kind: input, shape index: {}]
  %s1 = inlined_call_operand.vmem [shape: bf16[32,128], index: 1, kind: input, shape index: {}]
  %s2 = inlined_call_operand.vmem [shape: f32[1,128], index: 2, kind: input, shape index: {}]
  %s3 = inlined_call_operand.vmem [shape: bf16[128,128], index: 3, kind: input, shape index: {}]
  %s4 = inlined_call_operand.vmem [shape: f32[1,128], index: 4, kind: input, shape index: {}]
  %s5 = inlined_call_operand.hbm [shape: bf16[256,128], index: 5, kind: output, shape index: {}]
  %s6 = sld [smem:[#allocation0]]
  $region30: #{classifier_forward.1} parent=0
    _
  %s8 = ssub.s32 1, %s6
  %s9 = scalar_select 0, %s8, %s6
  $region1: #{classifier_forward.1} parent=0
    #allocation2 [shape = 'u8[65536]{0}', space=vmem, size = 0x10000, scoped, tag = 'output window, operand 0, single buffered']
    #allocation3 [shape = 's32[1]{0}', space=sflag, size = 0x4, scoped, tag = 'scoped memory for classifier_forward.1']
    %10 = vsyncpa [#allocation3], 0
    // Predicated region
    $region2: #{classifier_forward.1} parent=1 // pred_check
      _
    $region3: #{classifier_forward.1} parent=1 // pred_check_branch
      %12 = sbr.rel (0) target = $region5
    $region4: #{classifier_forward.1} parent=1 // pred_region
      _
    $region5: #{classifier_forward.1} parent=1 // pred_fallthru
      _
    // Predicated region
    $region6: #{classifier_forward.1} parent=1 // pred_check
      _
    $region7: #{classifier_forward.1} parent=1 // pred_check_branch
      %14 = sbr.rel (0) target = $region9
    $region8: #{classifier_forward.1} parent=1 // pred_region
      _
    $region9: #{classifier_forward.1} parent=1 // pred_fallthru
      _
    // Predicated region
    $region10: #{classifier_forward.1} parent=1 // pred_check
      _
    $region11: #{classifier_forward.1} parent=1 // pred_check_branch
      %16 = sbr.rel (0) target = $region13
    $region12: #{classifier_forward.1} parent=1 // pred_region
      _
    $region13: #{classifier_forward.1} parent=1 // pred_fallthru
      _
    // Predicated region
    $region14: #{classifier_forward.1} parent=1 // pred_check
      _
    $region15: #{classifier_forward.1} parent=1 // pred_check_branch
      %18 = sbr.rel (0) target = $region17
    $region16: #{classifier_forward.1} parent=1 // pred_region
      _
    $region17: #{classifier_forward.1} parent=1 // pred_fallthru
      _
    // Predicated region
    $region18: #{classifier_forward.1} parent=1 // pred_check
      _
    $region19: #{classifier_forward.1} parent=1 // pred_check_branch
      %20 = sbr.rel (0) target = $region21
    $region20: #{classifier_forward.1} parent=1 // pred_region
      _
    $region21: #{classifier_forward.1} parent=1 // pred_fallthru
      _
    %v22 = vld [vmem:[%s0] sm:$0xff]
    %v23 = vld [vmem:[%s0 + $0x8] sm:$0xff]
    %v24 = vld [vmem:[%s0 + $0x10] sm:$0xff]
    %v25 = vld [vmem:[%s0 + $0x18] sm:$0xff]
    %v26 = vld [vmem:[%s0 + $0x20] sm:$0xff]
    %v27 = vld [vmem:[%s0 + $0x28] sm:$0xff]
    %v28 = vld [vmem:[%s0 + $0x30] sm:$0xff]
    %v29 = vld [vmem:[%s0 + $0x38] sm:$0xff]
    %v30 = vld [vmem:[%s0 + $0x40] sm:$0xff]
    %v31 = vld [vmem:[%s0 + $0x48] sm:$0xff]
    %v32 = vld [vmem:[%s0 + $0x50] sm:$0xff]
    %v33 = vld [vmem:[%s0 + $0x58] sm:$0xff]
    %v34 = vld [vmem:[%s0 + $0x60] sm:$0xff]
    %v35 = vld [vmem:[%s0 + $0x68] sm:$0xff]
    %v36 = vld [vmem:[%s0 + $0x70] sm:$0xff]
    %v37 = vld [vmem:[%s0 + $0x78] sm:$0xff]
    %v38 = vld [vmem:[%s0 + $0x80] sm:$0xff]
    %v39 = vld [vmem:[%s0 + $0x88] sm:$0xff]
    %v40 = vld [vmem:[%s0 + $0x90] sm:$0xff]
    %v41 = vld [vmem:[%s0 + $0x98] sm:$0xff]
    %v42 = vld [vmem:[%s0 + $0xa0] sm:$0xff]
    %v43 = vld [vmem:[%s0 + $0xa8] sm:$0xff]
    %v44 = vld [vmem:[%s0 + $0xb0] sm:$0xff]
    %v45 = vld [vmem:[%s0 + $0xb8] sm:$0xff]
    %v46 = vld [vmem:[%s0 + $0xc0] sm:$0xff]
    %v47 = vld [vmem:[%s0 + $0xc8] sm:$0xff]
    %v48 = vld [vmem:[%s0 + $0xd0] sm:$0xff]
    %v49 = vld [vmem:[%s0 + $0xd8] sm:$0xff]
    %v50 = vld [vmem:[%s0 + $0xe0] sm:$0xff]
    %v51 = vld [vmem:[%s0 + $0xe8] sm:$0xff]
    %v52 = vld [vmem:[%s0 + $0xf0] sm:$0xff]
    %v53 = vld [vmem:[%s0 + $0xf8] sm:$0xff]
    %v54 = vpack.c.bf16 %v23, %v22
    %v55 = vpack.c.bf16 %v25, %v24
    %v56 = vpack.c.bf16 %v27, %v26
    %v57 = vpack.c.bf16 %v29, %v28
    %v58 = vpack.c.bf16 %v31, %v30
    %v59 = vpack.c.bf16 %v33, %v32
    %v60 = vpack.c.bf16 %v35, %v34
    %v61 = vpack.c.bf16 %v37, %v36
    %v62 = vpack.c.bf16 %v39, %v38
    %v63 = vpack.c.bf16 %v41, %v40
    %v64 = vpack.c.bf16 %v43, %v42
    %v65 = vpack.c.bf16 %v45, %v44
    %v66 = vpack.c.bf16 %v47, %v46
    %v67 = vpack.c.bf16 %v49, %v48
    %v68 = vpack.c.bf16 %v51, %v50
    %v69 = vpack.c.bf16 %v53, %v52
    %v70 = vld [vmem:[%s1] sm:$0xf]
    %v71 = vld [vmem:[%s1 + $0x4] sm:$0xf]
    %v72 = vld [vmem:[%s1 + $0x8] sm:$0xf]
    %v73 = vld [vmem:[%s1 + $0xc] sm:$0xf]
    %v74 = vld [vmem:[%s2] sm:$0x1]
    %v76 = vperm.slane %v74, 0
    %v82 = vunpack.c.l.b16 %v70
    %v83 = vunpack.c.l.b16 %v71
    %v84 = vunpack.c.l.b16 %v72
    %v85 = vunpack.c.l.b16 %v73
    %v86 = vpack.c.b16 %v83, %v82
    %v87 = vpack.c.b16 %v85, %v84
    %vm90 = vcmask 261120
    %v92 = vsel %vm90, %v54, 0
    %v95 = vsel %vm90, %v55, 0
    %v98 = vsel %vm90, %v56, 0
    %v101 = vsel %vm90, %v57, 0
    %v104 = vsel %vm90, %v58, 0
    %v107 = vsel %vm90, %v59, 0
    %v110 = vsel %vm90, %v60, 0
    %v113 = vsel %vm90, %v61, 0
    %v116 = vsel %vm90, %v62, 0
    %v119 = vsel %vm90, %v63, 0
    %v122 = vsel %vm90, %v64, 0
    %v125 = vsel %vm90, %v65, 0
    %v128 = vsel %vm90, %v66, 0
    %v131 = vsel %vm90, %v67, 0
    %v134 = vsel %vm90, %v68, 0
    %v137 = vsel %vm90, %v69, 0
    %139 = vmatpush.bf16.msra.mxu0 0
    %140 = vmatpush.bf16.msra.mxu0 0
    %141 = vmatpush.bf16.msra.mxu0 0
    %142 = vmatpush.bf16.msra.mxu0 0
    %143 = vmatpush.bf16.msra.mxu0 0
    %144 = vmatpush.bf16.msra.mxu0 0
    %145 = vmatpush.bf16.msra.mxu0 %v87
    %146 = vmatpush.bf16.msra.mxu0 %v86
    %147 = vmatmul.bf16.gmra.mxu0 %v92
    %v148 = vpop.f32.mrf.mxu0
    %v149 = vadd.f32 %v76, %v148
    %v150 = vpop.f32.mrf.mxu0
    %v151 = vadd.f32 %v76, %v150
    %152 = vmatmul.bf16.gmra.mxu0 %v95
    %v153 = vpop.f32.mrf.mxu0
    %v154 = vadd.f32 %v76, %v153
    %v155 = vpop.f32.mrf.mxu0
    %v156 = vadd.f32 %v76, %v155
    %157 = vmatmul.bf16.gmra.mxu0 %v98
    %v158 = vpop.f32.mrf.mxu0
    %v159 = vadd.f32 %v76, %v158
    %v160 = vpop.f32.mrf.mxu0
    %v161 = vadd.f32 %v76, %v160
    %162 = vmatmul.bf16.gmra.mxu0 %v101
    %v163 = vpop.f32.mrf.mxu0
    %v164 = vadd.f32 %v76, %v163
    %v165 = vpop.f32.mrf.mxu0
    %v166 = vadd.f32 %v76, %v165
    %167 = vmatmul.bf16.gmra.mxu0 %v104
    %v168 = vpop.f32.mrf.mxu0
    %v169 = vadd.f32 %v76, %v168
    %v170 = vpop.f32.mrf.mxu0
    %v171 = vadd.f32 %v76, %v170
    %172 = vmatmul.bf16.gmra.mxu0 %v107
    %v173 = vpop.f32.mrf.mxu0
    %v174 = vadd.f32 %v76, %v173
    %v175 = vpop.f32.mrf.mxu0
    %v176 = vadd.f32 %v76, %v175
    %177 = vmatmul.bf16.gmra.mxu0 %v110
    %v178 = vpop.f32.mrf.mxu0
    %v179 = vadd.f32 %v76, %v178
    %v180 = vpop.f32.mrf.mxu0
    %v181 = vadd.f32 %v76, %v180
    %182 = vmatmul.bf16.gmra.mxu0 %v113
    %v183 = vpop.f32.mrf.mxu0
    %v184 = vadd.f32 %v76, %v183
    %v185 = vpop.f32.mrf.mxu0
    %v186 = vadd.f32 %v76, %v185
    %187 = vmatmul.bf16.gmra.mxu0 %v116
    %v188 = vpop.f32.mrf.mxu0
    %v189 = vadd.f32 %v76, %v188
    %v190 = vpop.f32.mrf.mxu0
    %v191 = vadd.f32 %v76, %v190
    %192 = vmatmul.bf16.gmra.mxu0 %v119
    %v193 = vpop.f32.mrf.mxu0
    %v194 = vadd.f32 %v76, %v193
    %v195 = vpop.f32.mrf.mxu0
    %v196 = vadd.f32 %v76, %v195
    %197 = vmatmul.bf16.gmra.mxu0 %v122
    %v198 = vpop.f32.mrf.mxu0
    %v199 = vadd.f32 %v76, %v198
    %v200 = vpop.f32.mrf.mxu0
    %v201 = vadd.f32 %v76, %v200
    %202 = vmatmul.bf16.gmra.mxu0 %v125
    %v203 = vpop.f32.mrf.mxu0
    %v204 = vadd.f32 %v76, %v203
    %v205 = vpop.f32.mrf.mxu0
    %v206 = vadd.f32 %v76, %v205
    %207 = vmatmul.bf16.gmra.mxu0 %v128
    %v208 = vpop.f32.mrf.mxu0
    %v209 = vadd.f32 %v76, %v208
    %v210 = vpop.f32.mrf.mxu0
    %v211 = vadd.f32 %v76, %v210
    %212 = vmatmul.bf16.gmra.mxu0 %v131
    %v213 = vpop.f32.mrf.mxu0
    %v214 = vadd.f32 %v76, %v213
    %v215 = vpop.f32.mrf.mxu0
    %v216 = vadd.f32 %v76, %v215
    %217 = vmatmul.bf16.gmra.mxu0 %v134
    %v218 = vpop.f32.mrf.mxu0
    %v219 = vadd.f32 %v76, %v218
    %v220 = vpop.f32.mrf.mxu0
    %v221 = vadd.f32 %v76, %v220
    %222 = vmatmul.bf16.gmra.mxu0 %v137
    %v223 = vpop.f32.mrf.mxu0
    %v224 = vadd.f32 %v76, %v223
    %v225 = vpop.f32.mrf.mxu0
    %v226 = vadd.f32 %v76, %v225
    %227 = vdwg.mxu0
    %v228 = vmax.f32 %v149, 0.0
    %v229 = vmax.f32 %v151, 0.0
    %v230 = vmax.f32 %v154, 0.0
    %v231 = vmax.f32 %v156, 0.0
    %v232 = vmax.f32 %v159, 0.0
    %v233 = vmax.f32 %v161, 0.0
    %v234 = vmax.f32 %v164, 0.0
    %v235 = vmax.f32 %v166, 0.0
    %v236 = vmax.f32 %v169, 0.0
    %v237 = vmax.f32 %v171, 0.0
    %v238 = vmax.f32 %v174, 0.0
    %v239 = vmax.f32 %v176, 0.0
    %v240 = vmax.f32 %v179, 0.0
    %v241 = vmax.f32 %v181, 0.0
    %v242 = vmax.f32 %v184, 0.0
    %v243 = vmax.f32 %v186, 0.0
    %v244 = vmax.f32 %v189, 0.0
    %v245 = vmax.f32 %v191, 0.0
    %v246 = vmax.f32 %v194, 0.0
    %v247 = vmax.f32 %v196, 0.0
    %v248 = vmax.f32 %v199, 0.0
    %v249 = vmax.f32 %v201, 0.0
    %v250 = vmax.f32 %v204, 0.0
    %v251 = vmax.f32 %v206, 0.0
    %v252 = vmax.f32 %v209, 0.0
    %v253 = vmax.f32 %v211, 0.0
    %v254 = vmax.f32 %v214, 0.0
    %v255 = vmax.f32 %v216, 0.0
    %v256 = vmax.f32 %v219, 0.0
    %v257 = vmax.f32 %v221, 0.0
    %v258 = vmax.f32 %v224, 0.0
    %v259 = vmax.f32 %v226, 0.0
    %v260 = vpack.c.bf16 %v229, %v228
    %v261 = vpack.c.bf16 %v231, %v230
    %v262 = vpack.c.bf16 %v233, %v232
    %v263 = vpack.c.bf16 %v235, %v234
    %v264 = vpack.c.bf16 %v237, %v236
    %v265 = vpack.c.bf16 %v239, %v238
    %v266 = vpack.c.bf16 %v241, %v240
    %v267 = vpack.c.bf16 %v243, %v242
    %v268 = vpack.c.bf16 %v245, %v244
    %v269 = vpack.c.bf16 %v247, %v246
    %v270 = vpack.c.bf16 %v249, %v248
    %v271 = vpack.c.bf16 %v251, %v250
    %v272 = vpack.c.bf16 %v253, %v252
    %v273 = vpack.c.bf16 %v255, %v254
    %v274 = vpack.c.bf16 %v257, %v256
    %v275 = vpack.c.bf16 %v259, %v258
    %v276 = vld [vmem:[%s3] sm:$0xf]
    %v277 = vld [vmem:[%s3 + $0x4] sm:$0xf]
    %v278 = vld [vmem:[%s3 + $0x8] sm:$0xf]
    %v279 = vld [vmem:[%s3 + $0xc] sm:$0xf]
    %v280 = vld [vmem:[%s3 + $0x10] sm:$0xf]
    %v281 = vld [vmem:[%s3 + $0x14] sm:$0xf]
    %v282 = vld [vmem:[%s3 + $0x18] sm:$0xf]
    %v283 = vld [vmem:[%s3 + $0x1c] sm:$0xf]
    %v284 = vld [vmem:[%s3 + $0x20] sm:$0xf]
    %v285 = vld [vmem:[%s3 + $0x24] sm:$0xf]
    %v286 = vld [vmem:[%s3 + $0x28] sm:$0xf]
    %v287 = vld [vmem:[%s3 + $0x2c] sm:$0xf]
    %v288 = vld [vmem:[%s3 + $0x30] sm:$0xf]
    %v289 = vld [vmem:[%s3 + $0x34] sm:$0xf]
    %v290 = vld [vmem:[%s3 + $0x38] sm:$0xf]
    %v291 = vld [vmem:[%s3 + $0x3c] sm:$0xf]
    %v292 = vld [vmem:[%s4] sm:$0x1]
    %v294 = vperm.slane %v292, 0
    %v312 = vunpack.c.l.b16 %v276
    %v313 = vunpack.c.l.b16 %v277
    %v314 = vunpack.c.l.b16 %v278
    %v315 = vunpack.c.l.b16 %v279
    %v316 = vunpack.c.l.b16 %v280
    %v317 = vunpack.c.l.b16 %v281
    %v318 = vunpack.c.l.b16 %v282
    %v319 = vunpack.c.l.b16 %v283
    %v320 = vunpack.c.l.b16 %v284
    %v321 = vunpack.c.l.b16 %v285
    %v322 = vunpack.c.l.b16 %v286
    %v323 = vunpack.c.l.b16 %v287
    %v324 = vunpack.c.l.b16 %v288
    %v325 = vunpack.c.l.b16 %v289
    %v326 = vunpack.c.l.b16 %v290
    %v327 = vunpack.c.l.b16 %v291
    %v328 = vpack.c.b16 %v313, %v312
    %v329 = vpack.c.b16 %v315, %v314
    %v330 = vpack.c.b16 %v317, %v316
    %v331 = vpack.c.b16 %v319, %v318
    %v332 = vpack.c.b16 %v321, %v320
    %v333 = vpack.c.b16 %v323, %v322
    %v334 = vpack.c.b16 %v325, %v324
    %v335 = vpack.c.b16 %v327, %v326
    %344 = vmatpush.bf16.msra.mxu0 %v335
    %345 = vmatpush.bf16.msra.mxu0 %v334
    %346 = vmatpush.bf16.msra.mxu0 %v333
    %347 = vmatpush.bf16.msra.mxu0 %v332
    %348 = vmatpush.bf16.msra.mxu0 %v331
    %349 = vmatpush.bf16.msra.mxu0 %v330
    %350 = vmatpush.bf16.msra.mxu0 %v329
    %351 = vmatpush.bf16.msra.mxu0 %v328
    %352 = vmatmul.bf16.gmra.mxu0 %v260
    %v353 = vpop.f32.mrf.mxu0
    %v354 = vadd.f32 %v294, %v353
    %v355 = vpop.f32.mrf.mxu0
    %v356 = vadd.f32 %v294, %v355
    %357 = vmatmul.bf16.gmra.mxu0 %v261
    %v358 = vpop.f32.mrf.mxu0
    %v359 = vadd.f32 %v294, %v358
    %v360 = vpop.f32.mrf.mxu0
    %v361 = vadd.f32 %v294, %v360
    %362 = vmatmul.bf16.gmra.mxu0 %v262
    %v363 = vpop.f32.mrf.mxu0
    %v364 = vadd.f32 %v294, %v363
    %v365 = vpop.f32.mrf.mxu0
    %v366 = vadd.f32 %v294, %v365
    %367 = vmatmul.bf16.gmra.mxu0 %v263
    %v368 = vpop.f32.mrf.mxu0
    %v369 = vadd.f32 %v294, %v368
    %v370 = vpop.f32.mrf.mxu0
    %v371 = vadd.f32 %v294, %v370
    %372 = vmatmul.bf16.gmra.mxu0 %v264
    %v373 = vpop.f32.mrf.mxu0
    %v374 = vadd.f32 %v294, %v373
    %v375 = vpop.f32.mrf.mxu0
    %v376 = vadd.f32 %v294, %v375
    %377 = vmatmul.bf16.gmra.mxu0 %v265
    %v378 = vpop.f32.mrf.mxu0
    %v379 = vadd.f32 %v294, %v378
    %v380 = vpop.f32.mrf.mxu0
    %v381 = vadd.f32 %v294, %v380
    %382 = vmatmul.bf16.gmra.mxu0 %v266
    %v383 = vpop.f32.mrf.mxu0
    %v384 = vadd.f32 %v294, %v383
    %v385 = vpop.f32.mrf.mxu0
    %v386 = vadd.f32 %v294, %v385
    %387 = vmatmul.bf16.gmra.mxu0 %v267
    %v388 = vpop.f32.mrf.mxu0
    %v389 = vadd.f32 %v294, %v388
    %v390 = vpop.f32.mrf.mxu0
    %v391 = vadd.f32 %v294, %v390
    %392 = vmatmul.bf16.gmra.mxu0 %v268
    %v393 = vpop.f32.mrf.mxu0
    %v394 = vadd.f32 %v294, %v393
    %v395 = vpop.f32.mrf.mxu0
    %v396 = vadd.f32 %v294, %v395
    %397 = vmatmul.bf16.gmra.mxu0 %v269
    %v398 = vpop.f32.mrf.mxu0
    %v399 = vadd.f32 %v294, %v398
    %v400 = vpop.f32.mrf.mxu0
    %v401 = vadd.f32 %v294, %v400
    %402 = vmatmul.bf16.gmra.mxu0 %v270
    %v403 = vpop.f32.mrf.mxu0
    %v404 = vadd.f32 %v294, %v403
    %v405 = vpop.f32.mrf.mxu0
    %v406 = vadd.f32 %v294, %v405
    %407 = vmatmul.bf16.gmra.mxu0 %v271
    %v408 = vpop.f32.mrf.mxu0
    %v409 = vadd.f32 %v294, %v408
    %v410 = vpop.f32.mrf.mxu0
    %v411 = vadd.f32 %v294, %v410
    %412 = vmatmul.bf16.gmra.mxu0 %v272
    %v413 = vpop.f32.mrf.mxu0
    %v414 = vadd.f32 %v294, %v413
    %v415 = vpop.f32.mrf.mxu0
    %v416 = vadd.f32 %v294, %v415
    %417 = vmatmul.bf16.gmra.mxu0 %v273
    %v418 = vpop.f32.mrf.mxu0
    %v419 = vadd.f32 %v294, %v418
    %v420 = vpop.f32.mrf.mxu0
    %v421 = vadd.f32 %v294, %v420
    %422 = vmatmul.bf16.gmra.mxu0 %v274
    %v423 = vpop.f32.mrf.mxu0
    %v424 = vadd.f32 %v294, %v423
    %v425 = vpop.f32.mrf.mxu0
    %v426 = vadd.f32 %v294, %v425
    %427 = vmatmul.bf16.gmra.mxu0 %v275
    %v428 = vpop.f32.mrf.mxu0
    %v429 = vadd.f32 %v294, %v428
    %v430 = vpop.f32.mrf.mxu0
    %v431 = vadd.f32 %v294, %v430
    %432 = vdwg.mxu0
    %v433 = vpack.c.bf16 %v354, %v354
    %v434 = vpack.c.bf16 %v356, %v356
    %v435 = vpack.c.bf16 %v359, %v359
    %v436 = vpack.c.bf16 %v361, %v361
    %v437 = vpack.c.bf16 %v364, %v364
    %v438 = vpack.c.bf16 %v366, %v366
    %v439 = vpack.c.bf16 %v369, %v369
    %v440 = vpack.c.bf16 %v371, %v371
    %v441 = vpack.c.bf16 %v374, %v374
    %v442 = vpack.c.bf16 %v376, %v376
    %v443 = vpack.c.bf16 %v379, %v379
    %v444 = vpack.c.bf16 %v381, %v381
    %v445 = vpack.c.bf16 %v384, %v384
    %v446 = vpack.c.bf16 %v386, %v386
    %v447 = vpack.c.bf16 %v389, %v389
    %v448 = vpack.c.bf16 %v391, %v391
    %v449 = vpack.c.bf16 %v394, %v394
    %v450 = vpack.c.bf16 %v396, %v396
    %v451 = vpack.c.bf16 %v399, %v399
    %v452 = vpack.c.bf16 %v401, %v401
    %v453 = vpack.c.bf16 %v404, %v404
    %v454 = vpack.c.bf16 %v406, %v406
    %v455 = vpack.c.bf16 %v409, %v409
    %v456 = vpack.c.bf16 %v411, %v411
    %v457 = vpack.c.bf16 %v414, %v414
    %v458 = vpack.c.bf16 %v416, %v416
    %v459 = vpack.c.bf16 %v419, %v419
    %v460 = vpack.c.bf16 %v421, %v421
    %v461 = vpack.c.bf16 %v424, %v424
    %v462 = vpack.c.bf16 %v426, %v426
    %v463 = vpack.c.bf16 %v429, %v429
    %v464 = vpack.c.bf16 %v431, %v431
    %465 = vst [vmem:[#allocation2] sm:$0xf] %v433
    %466 = vst [vmem:[#allocation2 + $0x4] sm:$0xf] %v434
    %467 = vst [vmem:[#allocation2 + $0x8] sm:$0xf] %v435
    %468 = vst [vmem:[#allocation2 + $0xc] sm:$0xf] %v436
    %469 = vst [vmem:[#allocation2 + $0x10] sm:$0xf] %v437
    %470 = vst [vmem:[#allocation2 + $0x14] sm:$0xf] %v438
    %471 = vst [vmem:[#allocation2 + $0x18] sm:$0xf] %v439
    %472 = vst [vmem:[#allocation2 + $0x1c] sm:$0xf] %v440
    %473 = vst [vmem:[#allocation2 + $0x20] sm:$0xf] %v441
    %474 = vst [vmem:[#allocation2 + $0x24] sm:$0xf] %v442
    %475 = vst [vmem:[#allocation2 + $0x28] sm:$0xf] %v443
    %476 = vst [vmem:[#allocation2 + $0x2c] sm:$0xf] %v444
    %477 = vst [vmem:[#allocation2 + $0x30] sm:$0xf] %v445
    %478 = vst [vmem:[#allocation2 + $0x34] sm:$0xf] %v446
    %479 = vst [vmem:[#allocation2 + $0x38] sm:$0xf] %v447
    %480 = vst [vmem:[#allocation2 + $0x3c] sm:$0xf] %v448
    %481 = vst [vmem:[#allocation2 + $0x40] sm:$0xf] %v449
    %482 = vst [vmem:[#allocation2 + $0x44] sm:$0xf] %v450
    %483 = vst [vmem:[#allocation2 + $0x48] sm:$0xf] %v451
    %484 = vst [vmem:[#allocation2 + $0x4c] sm:$0xf] %v452
    %485 = vst [vmem:[#allocation2 + $0x50] sm:$0xf] %v453
    %486 = vst [vmem:[#allocation2 + $0x54] sm:$0xf] %v454
    %487 = vst [vmem:[#allocation2 + $0x58] sm:$0xf] %v455
    %488 = vst [vmem:[#allocation2 + $0x5c] sm:$0xf] %v456
    %489 = vst [vmem:[#allocation2 + $0x60] sm:$0xf] %v457
    %490 = vst [vmem:[#allocation2 + $0x64] sm:$0xf] %v458
    %491 = vst [vmem:[#allocation2 + $0x68] sm:$0xf] %v459
    %492 = vst [vmem:[#allocation2 + $0x6c] sm:$0xf] %v460
    %493 = vst [vmem:[#allocation2 + $0x70] sm:$0xf] %v461
    %494 = vst [vmem:[#allocation2 + $0x74] sm:$0xf] %v462
    %495 = vst [vmem:[#allocation2 + $0x78] sm:$0xf] %v463
    %496 = vst [vmem:[#allocation2 + $0x7c] sm:$0xf] %v464
    // Predicated region
    $region22: #{classifier_forward.1} parent=1 // pred_check
      _
    $region23: #{classifier_forward.1} parent=1 // pred_check_branch
      %498 = sbr.rel (0) target = $region25
    $region24: #{classifier_forward.1} parent=1 // pred_region
      %500 = vsyncadd [#allocation3], 0
      %s501 = sshll.u32 [#allocation2], 4
      %s502 = int_to_ptr.vmem [resolvable:$true] %s501
      %s503 = sshll.u32 %s5, 4
      %s504 = int_to_ptr.hbm [resolvable:$true] %s503
      %509 = dma.vmem_to_hbm [thread:$0]  %s502, 2048, %s504, [#allocation3], 64, 64, 4
    $region25: #{classifier_forward.1} parent=1 // pred_fallthru
      _
    // Predicated region
    $region26: #{classifier_forward.1} parent=1 // pred_check
      _
    $region27: #{classifier_forward.1} parent=1 // pred_check_branch
      %511 = sbr.rel (0) target = $region29
    $region28: #{classifier_forward.1} parent=1 // pred_region
      %513 = dma.done [#allocation3], 2048
    $region29: #{classifier_forward.1} parent=1 // pred_fallthru
      _
    %514 = vsyncpa [#allocation3], 1

</llo_original>
